<compile_context>
chip_gen: v7x
topology: tpu7x:2x2x1
jax: 0.10.0
libtpu: 0.0.40
codegen_flags: <defaults>
</compile_context>

<pallas_src>
import jax
import jax.numpy as jnp
from jax.experimental import pallas as pl
from jax.experimental.pallas import tpu as pltpu


def _round_up(v, m):
    return ((v + m - 1) // m) * m


# ----------------------------------------------------------------------------------------
# Kernel 1: synthetic UniMol backbone -> per-molecule cls_repr
#   cls_repr[m] = gelu(meanpool_atoms(x[m]) @ W1 + b1) @ W2 + b2
# Tiled over molecules; both matmuls feed the MXU with bf16 operands / f32 accumulation.
# The atom mask is rebuilt in-kernel from per-molecule atom counts (no mask DMA stream).
# ----------------------------------------------------------------------------------------
def _encoder_kernel(x_ref, cnt_ref, w1_ref, b1_ref, w2_ref, b2_ref, cls_ref):
    x = x_ref[...]                                           # (TM, A, F)
    tm, max_atoms, _ = x.shape
    cnt = cnt_ref[...]                                       # (TM, 1) int32
    a_idx = jax.lax.broadcasted_iota(jnp.int32, (tm, max_atoms), 1)
    amask = (a_idx < cnt).astype(jnp.float32)                # (TM, A)

    pooled = jnp.sum(x.astype(jnp.float32) * amask[:, :, None], axis=1)      # (TM, F)
    denom = jnp.maximum(jnp.sum(amask, axis=1, keepdims=True), 1.0)
    pooled = pooled / denom                                  # masked mean pool (f32)

    # Weights arrive pre-cast to bf16 (wrapper); only the small pooled/h activations are
    # cast in-kernel for the MXU. Biases / activations stay f32.
    h = jnp.dot(pooled.astype(jnp.bfloat16), w1_ref[...],
                preferred_element_type=jnp.float32) + b1_ref[...]
    # TODO(synk): torch nn.GELU defaults to exact erf; tanh-approx GELU used here.
    h = jax.nn.gelu(h)
    out = jnp.dot(h.astype(jnp.bfloat16), w2_ref[...],
                  preferred_element_type=jnp.float32) + b2_ref[...]
    cls_ref[...] = out.astype(cls_ref.dtype)


def _pick_tile(total_needed, tm, max_atoms, feat, hidden, x_bytes=4,
               vmem_budget_bytes=40 * 1024 * 1024):
    """Choose the molecule tile: as large as the VMEM budget allows (v7x 64 MiB safe),
    never far beyond the problem size, and >= 2 grid steps when possible (v7x = 2 TCs)."""
    tm = max(8, _round_up(tm, 8))

    def vmem_need(t):
        return (2 * t * max_atoms * feat * x_bytes            # x, double-buffered
                + 2 * t * 4                                   # atom counts
                + 2 * t * hidden * 4                          # cls_repr out
                + (feat + hidden) * hidden * 2                # bf16 weights
                + 2 * hidden * 4)                             # biases

    while tm > 8 and vmem_need(tm) > vmem_budget_bytes:       # v7x: halve instead of OOM
        tm //= 2
    tm = max(8, min(tm, _round_up(total_needed, 8)))          # don't over-pad tiny inputs
    if 8 < total_needed <= tm:                                # keep >= 2 grid steps
        tm = max(8, _round_up(-(-total_needed // 2), 8))
    return tm


def encode_cls_repr(x, atom_counts, params, tm):
    total_pad, max_atoms, feat = x.shape
    hidden = params["w2"].shape[1]
    assert total_pad % tm == 0, "pad molecule count to a multiple of tm in the wrapper"
    grid = (total_pad // tm,)

    # Pre-cast weights to bf16 once in the wrapper (halves weight DMA / VMEM residency
    # and removes per-grid-step VPU cast work; important on v5e which has no bf16 VPU).
    w1 = params["w1"].astype(jnp.bfloat16)
    w2 = params["w2"].astype(jnp.bfloat16)
    b1 = params["b1"].astype(jnp.float32)
    b2 = params["b2"].astype(jnp.float32)
    cnt = atom_counts.reshape(total_pad, 1).astype(jnp.int32)

    cost = pl.CostEstimate(
        flops=(2 * total_pad * max_atoms * feat
               + 2 * total_pad * feat * hidden
               + 2 * total_pad * hidden * hidden),
        transcendentals=total_pad * hidden,
        bytes_accessed=(4 * total_pad * max_atoms * feat + 4 * total_pad
                        + 2 * (feat + hidden) * hidden + 4 * 2 * hidden
                        + 4 * total_pad * hidden),
    )

    return pl.pallas_call(
        _encoder_kernel,
        grid=grid,
        in_specs=[
            pl.BlockSpec((tm, max_atoms, feat), lambda i: (i, 0, 0)),
            pl.BlockSpec((tm, 1), lambda i: (i, 0)),
            pl.BlockSpec((feat, hidden), lambda i: (0, 0)),
            pl.BlockSpec((1, hidden), lambda i: (0, 0)),
            pl.BlockSpec((hidden, hidden), lambda i: (0, 0)),
            pl.BlockSpec((1, hidden), lambda i: (0, 0)),
        ],
        out_specs=pl.BlockSpec((tm, hidden), lambda i: (i, 0)),
        out_shape=jax.ShapeDtypeStruct((total_pad, hidden), jnp.float32),
        compiler_params=pltpu.CompilerParams(
            dimension_semantics=("parallel",),
            vmem_limit_bytes=48 * 1024 * 1024),
        cost_estimate=cost,
    )(x, cnt, w1, b1, w2, b2)


# ----------------------------------------------------------------------------------------
# Kernel 2: torch.split(cls_repr, num_mols) + pad_sequence(batch_first)
#   out[r, j, :] = cls_repr[offset[r] + j]  if j < count[r] else 0
# One grid step per reaction; cls_repr stays in HBM (pl.ANY) and a single contiguous
# manual DMA of max_mols rows starting at the scalar-prefetched offset lands in a VMEM
# scratch; rows beyond count[r] (which belong to the next reaction / padding) are zeroed
# before the pipelined writeback.  Batch mask is computed in plain JAX by the wrapper.
# ----------------------------------------------------------------------------------------
def _pad_split_kernel(off_ref, cnt_ref, cls_hbm, out_ref, buf, sem):
    r = pl.program_id(0)
    max_mols = out_ref.shape[1]
    cp = pltpu.make_async_copy(
        cls_hbm.at[pl.ds(off_ref[r], max_mols), :], buf, sem)
    cp.start()
    cp.wait()
    j = jax.lax.broadcasted_iota(jnp.int32, buf.shape, 0)        # (max_mols, hidden)
    out_ref[0] = jnp.where(j < cnt_ref[r], buf[...], 0.0).astype(out_ref.dtype)


def pad_split(cls_repr, num_mols_list):
    total_pad, hidden = cls_repr.shape
    n_reac = len(num_mols_list)
    max_mols = max(num_mols_list)

    counts = jnp.asarray(num_mols_list, jnp.int32)
    offs = [0]
    for n in num_mols_list[:-1]:
        offs.append(offs[-1] + n)
    # DMA has no bounds check: the wrapper pads cls_repr so off[r] + max_mols never
    # runs off the end of the array.
    assert offs[-1] + max_mols <= total_pad, "wrapper must pad cls_repr rows"
    offsets = jnp.asarray(offs, jnp.int32)

    cost = pl.CostEstimate(
        flops=n_reac * max_mols * hidden,
        transcendentals=0,
        bytes_accessed=4 * 2 * n_reac * max_mols * hidden,
    )

    grid_spec = pltpu.PrefetchScalarGridSpec(
        num_scalar_prefetch=2,
        grid=(n_reac,),
        in_specs=[pl.BlockSpec(memory_space=pl.ANY)],
        out_specs=pl.BlockSpec((1, max_mols, hidden), lambda r, off, cnt: (r, 0, 0)),
        scratch_shapes=[
            pltpu.VMEM((max_mols, hidden), jnp.float32),
            pltpu.SemaphoreType.DMA,
        ],
    )
    padded = pl.pallas_call(
        _pad_split_kernel,
        grid_spec=grid_spec,
        out_shape=jax.ShapeDtypeStruct((n_reac, max_mols, hidden), jnp.float32),
        compiler_params=pltpu.CompilerParams(dimension_semantics=("parallel",)),
        cost_estimate=cost,
    )(offsets, counts, cls_repr)

    mask = (jnp.arange(max_mols)[None, :] < counts[:, None]).astype(jnp.int32)
    return padded, mask


# ----------------------------------------------------------------------------------------
# UniMolR.forward (cls != 0 path)
# ----------------------------------------------------------------------------------------
def unimol_r_forward(x, atom_counts, params, num_mols_list, cls=1, tm=256):
    if cls == 0:
        # TODO(synk): cls==0 path requires per-atom reprs from the backbone
        # ([cls_repr; atomic_reprs] concat per molecule); not reproduced here.
        raise NotImplementedError("cls==0 atomic-repr path not implemented")

    total_mols, max_atoms, feat = x.shape
    hidden = params["w2"].shape[1]
    max_mols = max(num_mols_list)

    # Pad molecules so that (a) the count divides the tile, and (b) Kernel 2's fixed-size
    # per-reaction DMA (max_mols rows from offset[r]) never reads past the array.
    needed = total_mols + max_mols
    tm_eff = _pick_tile(needed, tm, max_atoms, feat, hidden)
    total_pad = _round_up(needed, tm_eff)
    pad = total_pad - total_mols
    if pad:
        x = jnp.pad(x, ((0, pad), (0, 0), (0, 0)))
        atom_counts = jnp.pad(atom_counts, ((0, pad),))
    # Padding molecules have atom_count == 0; their cls_repr (gelu(b1)@W2+b2) is nonzero
    # but Kernel 2 never selects them as valid rows (j >= count[r] is zeroed).

    cls_repr = encode_cls_repr(x, atom_counts, params, tm=tm_eff)   # (total_pad, hidden)
    return pad_split(cls_repr, num_mols_list)


# ----------------------------------------------------------------------------------------
# Reference (pure JAX) for a correctness check (same bf16-operand matmul math)
# ----------------------------------------------------------------------------------------
def _reference(x, atom_counts, params, num_mols_list):
    max_atoms = x.shape[1]
    m = (jnp.arange(max_atoms)[None, :] < atom_counts[:, None]).astype(jnp.float32)
    pooled = jnp.sum(x * m[:, :, None], axis=1) / jnp.maximum(
        jnp.sum(m, axis=1, keepdims=True), 1.0)
    h = jax.nn.gelu(jnp.dot(pooled.astype(jnp.bfloat16),
                            params["w1"].astype(jnp.bfloat16),
                            preferred_element_type=jnp.float32) + params["b1"])
    cls_repr = jnp.dot(h.astype(jnp.bfloat16), params["w2"].astype(jnp.bfloat16),
                       preferred_element_type=jnp.float32) + params["b2"]

    n_reac = len(num_mols_list)
    max_mols = max(num_mols_list)
    hidden = cls_repr.shape[1]
    padded = jnp.zeros((n_reac, max_mols, hidden), jnp.float32)
    off = 0
    for r, n in enumerate(num_mols_list):
        padded = padded.at[r, :n].set(cls_repr[off:off + n])
        off += n
    mask = (jnp.arange(max_mols)[None, :] <
            jnp.asarray(num_mols_list)[:, None]).astype(jnp.int32)
    return padded, mask


if __name__ == "__main__":
    key = jax.random.PRNGKey(0)
    kx, km, k1, k2, k3, k4 = jax.random.split(key, 6)

    # small shapes: 7 molecules across 3 reactions, 16 atoms max, feat=hidden=128
    # (128 keeps the matmul N/K dims lane-dense / MXU friendly while staying small)
    num_mols = [3, 2, 2]
    total_mols, max_atoms, feat, hidden = sum(num_mols), 16, 128, 128

    x = jax.random.normal(kx, (total_mols, max_atoms, feat), jnp.float32)
    atom_counts = jax.random.randint(km, (total_mols,), 4, max_atoms + 1).astype(jnp.int32)

    params = {
        "w1": 0.1 * jax.random.normal(k1, (feat, hidden), jnp.float32),
        "b1": 0.1 * jax.random.normal(k2, (1, hidden), jnp.float32),
        "w2": 0.1 * jax.random.normal(k3, (hidden, hidden), jnp.float32),
        "b2": 0.1 * jax.random.normal(k4, (1, hidden), jnp.float32),
    }

    padded, mask = unimol_r_forward(x, atom_counts, params, num_mols, cls=1)
    padded = jax.block_until_ready(padded)
    mask = jax.block_until_ready(mask)

    ref_padded, ref_mask = _reference(x, atom_counts, params, num_mols)
    assert padded.shape == (len(num_mols), max(num_mols), hidden)
    assert mask.shape == (len(num_mols), max(num_mols))
    assert jnp.allclose(padded, ref_padded, rtol=1e-2, atol=1e-2), float(
        jnp.max(jnp.abs(padded - ref_padded)))
    assert jnp.array_equal(mask, ref_mask)

    print("KERNEL_OK")
</pallas_src>

<mosaic_0001>
module attributes {stable_mosaic.version = 11 : i64} {
  func.func @_encoder_kernel(%arg0: i32, %arg1: memref<8x16x128xf32, #tpu.memory_space<vmem>>, %arg2: memref<8x1xi32, #tpu.memory_space<vmem>>, %arg3: memref<128x128xbf16, #tpu.memory_space<vmem>>, %arg4: memref<1x128xf32, #tpu.memory_space<vmem>>, %arg5: memref<128x128xbf16, #tpu.memory_space<vmem>>, %arg6: memref<1x128xf32, #tpu.memory_space<vmem>>, %arg7: memref<8x128xf32, #tpu.memory_space<vmem>>) attributes {dimension_semantics = [#tpu.dimension_semantics<parallel>], iteration_bounds = array<i64: 2>, scalar_prefetch = 0 : i64, scratch_operands = 0 : i64, tpu.core_type = #tpu.core_type<tc>, window_params = [{transform_indices = @transform_0, window_bounds = array<i64: 8, 16, 128>}, {transform_indices = @transform_1, window_bounds = array<i64: 8, 1>}, {pipeline_mode = #tpu.pipeline_mode<synchronous>, transform_indices = @transform_2, window_bounds = array<i64: 128, 128>}, {pipeline_mode = #tpu.pipeline_mode<synchronous>, transform_indices = @transform_3, window_bounds = array<i64: 1, 128>}, {pipeline_mode = #tpu.pipeline_mode<synchronous>, transform_indices = @transform_4, window_bounds = array<i64: 128, 128>}, {pipeline_mode = #tpu.pipeline_mode<synchronous>, transform_indices = @transform_5, window_bounds = array<i64: 1, 128>}, {transform_indices = @transform_6, window_bounds = array<i64: 8, 128>}]} {
    %c0 = arith.constant 0 : index
    %c0_0 = arith.constant 0 : index
    %c0_1 = arith.constant 0 : index
    %0 = vector.load %arg1[%c0, %c0_0, %c0_1] : memref<8x16x128xf32, #tpu.memory_space<vmem>>, vector<8x16x128xf32>
    %c0_2 = arith.constant 0 : index
    %c0_3 = arith.constant 0 : index
    %1 = vector.load %arg2[%c0_2, %c0_3] : memref<8x1xi32, #tpu.memory_space<vmem>>, vector<8x1xi32>
    %2 = tpu.iota {dimensions = array<i32: 1>} : vector<8x16xi32>
    %3 = vector.broadcast %1 : vector<8x1xi32> to vector<8x16xi32>
    %4 = arith.cmpi slt, %2, %3 : vector<8x16xi32>
    %5 = arith.extui %4 : vector<8x16xi1> to vector<8x16xi32>
    %6 = arith.sitofp %5 : vector<8x16xi32> to vector<8x16xf32>
    %7 = vector.shape_cast %6 : vector<8x16xf32> to vector<8x16x1xf32>
    %8 = vector.broadcast %7 : vector<8x16x1xf32> to vector<8x16x128xf32>
    %9 = arith.mulf %0, %8 : vector<8x16x128xf32>
    %cst = arith.constant dense<0.000000e+00> : vector<8x128xf32>
    %10 = vector.multi_reduction <add>, %9, %cst [1] : vector<8x16x128xf32> to vector<8x128xf32>
    %cst_4 = arith.constant dense<0.000000e+00> : vector<8xf32>
    %11 = vector.multi_reduction <add>, %6, %cst_4 [1] : vector<8x16xf32> to vector<8xf32>
    %12 = vector.shape_cast %11 : vector<8xf32> to vector<8x1xf32>
    %cst_5 = arith.constant 1.000000e+00 : f32
    %13 = vector.broadcast %cst_5 : f32 to vector<8x1xf32>
    %14 = arith.maximumf %12, %13 : vector<8x1xf32>
    %15 = vector.broadcast %14 : vector<8x1xf32> to vector<8x128xf32>
    %16 = arith.divf %10, %15 : vector<8x128xf32>
    %17 = arith.truncf %16 : vector<8x128xf32> to vector<8x128xbf16>
    %c0_6 = arith.constant 0 : index
    %c0_7 = arith.constant 0 : index
    %18 = vector.load %arg3[%c0_6, %c0_7] : memref<128x128xbf16, #tpu.memory_space<vmem>>, vector<128x128xbf16>
    %cst_8 = arith.constant dense<0.000000e+00> : vector<8x128xf32>
    %19 = tpu.matmul %17, %18, %cst_8 {dimension_numbers = #tpu.dot_dimension_numbers<[1], [0], [0], [1], [0, 0, 1, 1], [], []>} : vector<8x128xbf16>, vector<128x128xbf16>, vector<8x128xf32> -> vector<8x128xf32>
    %c0_9 = arith.constant 0 : index
    %c0_10 = arith.constant 0 : index
    %20 = vector.load %arg4[%c0_9, %c0_10] : memref<1x128xf32, #tpu.memory_space<vmem>>, vector<1x128xf32>
    %21 = vector.broadcast %20 : vector<1x128xf32> to vector<8x128xf32>
    %22 = arith.addf %19, %21 : vector<8x128xf32>
    %23 = arith.mulf %22, %22 : vector<8x128xf32>
    %24 = arith.mulf %22, %23 : vector<8x128xf32>
    %cst_11 = arith.constant 4.471500e-02 : f32
    %25 = vector.broadcast %cst_11 : f32 to vector<8x128xf32>
    %26 = arith.mulf %25, %24 : vector<8x128xf32>
    %27 = arith.addf %22, %26 : vector<8x128xf32>
    %cst_12 = arith.constant 0.797884583 : f32
    %28 = vector.broadcast %cst_12 : f32 to vector<8x128xf32>
    %29 = arith.mulf %28, %27 : vector<8x128xf32>
    %30 = math.tanh %29 : vector<8x128xf32>
    %cst_13 = arith.constant 1.000000e+00 : f32
    %31 = vector.broadcast %cst_13 : f32 to vector<8x128xf32>
    %32 = arith.addf %31, %30 : vector<8x128xf32>
    %cst_14 = arith.constant 5.000000e-01 : f32
    %33 = vector.broadcast %cst_14 : f32 to vector<8x128xf32>
    %34 = arith.mulf %33, %32 : vector<8x128xf32>
    %35 = arith.mulf %22, %34 : vector<8x128xf32>
    %36 = arith.truncf %35 : vector<8x128xf32> to vector<8x128xbf16>
    %c0_15 = arith.constant 0 : index
    %c0_16 = arith.constant 0 : index
    %37 = vector.load %arg5[%c0_15, %c0_16] : memref<128x128xbf16, #tpu.memory_space<vmem>>, vector<128x128xbf16>
    %cst_17 = arith.constant dense<0.000000e+00> : vector<8x128xf32>
    %38 = tpu.matmul %36, %37, %cst_17 {dimension_numbers = #tpu.dot_dimension_numbers<[1], [0], [0], [1], [0, 0, 1, 1], [], []>} : vector<8x128xbf16>, vector<128x128xbf16>, vector<8x128xf32> -> vector<8x128xf32>
    %c0_18 = arith.constant 0 : index
    %c0_19 = arith.constant 0 : index
    %39 = vector.load %arg6[%c0_18, %c0_19] : memref<1x128xf32, #tpu.memory_space<vmem>>, vector<1x128xf32>
    %40 = vector.broadcast %39 : vector<1x128xf32> to vector<8x128xf32>
    %41 = arith.addf %38, %40 : vector<8x128xf32>
    %c0_20 = arith.constant 0 : index
    %c0_21 = arith.constant 0 : index
    %42 = vector.load %arg7[%c0_20, %c0_21] : memref<8x128xf32, #tpu.memory_space<vmem>>, vector<8x128xf32>
    tpu.vector_store %arg7[%c0_20, %c0_21], %41 {strides = array<i32>} : memref<8x128xf32, #tpu.memory_space<vmem>>, vector<8x128xf32>,
    return
  }
  func.func @transform_0(%arg0: i32) -> (i32, i32, i32) {
    %c0_i32 = arith.constant 0 : i32
    %c0_i32_0 = arith.constant 0 : i32
    %c0_i32_1 = arith.constant 0 : i32
    return %arg0, %c0_i32, %c0_i32_0 : i32, i32, i32
  }
  func.func @transform_1(%arg0: i32) -> (i32, i32) {
    %c0_i32 = arith.constant 0 : i32
    %c0_i32_0 = arith.constant 0 : i32
    return %arg0, %c0_i32 : i32, i32
  }
  func.func @transform_2(%arg0: i32) -> (i32, i32) {
    %c0_i32 = arith.constant 0 : i32
    %c0_i32_0 = arith.constant 0 : i32
    %c0_i32_1 = arith.constant 0 : i32
    return %c0_i32, %c0_i32_0 : i32, i32
  }
  func.func @transform_3(%arg0: i32) -> (i32, i32) {
    %c0_i32 = arith.constant 0 : i32
    %c0_i32_0 = arith.constant 0 : i32
    %c0_i32_1 = arith.constant 0 : i32
    return %c0_i32, %c0_i32_0 : i32, i32
  }
  func.func @transform_4(%arg0: i32) -> (i32, i32) {
    %c0_i32 = arith.constant 0 : i32
    %c0_i32_0 = arith.constant 0 : i32
    %c0_i32_1 = arith.constant 0 : i32
    return %c0_i32, %c0_i32_0 : i32, i32
  }
  func.func @transform_5(%arg0: i32) -> (i32, i32) {
    %c0_i32 = arith.constant 0 : i32
    %c0_i32_0 = arith.constant 0 : i32
    %c0_i32_1 = arith.constant 0 : i32
    return %c0_i32, %c0_i32_0 : i32, i32
  }
  func.func @transform_6(%arg0: i32) -> (i32, i32) {
    %c0_i32 = arith.constant 0 : i32
    %c0_i32_0 = arith.constant 0 : i32
    return %arg0, %c0_i32 : i32, i32
  }
}

</mosaic_0001>

<llo_original>
// kernel: tpu_custom_call.1
$region0: #{tpu_custom_call.1}
  #allocation0 [shape = 'u32[]', space=smem, size = 0x4, offset = 0x4, fixed_abs, tag = 'smem constant byte address 0x4 - core index']
  #allocation1 [shape = 'u32[144,128]{1,0:T(1,128)}', space=vmem, size = 0x12000, scoped, tag = 'internal scratch']
  %s0 = inlined_call_operand.hbm [shape: f32[16,16,128], index: 0, kind: input, shape index: {}]
  %s1 = inlined_call_operand.vmem [shape: s32[16,1], index: 1, kind: input, shape index: {}]
  %s2 = inlined_call_operand.hbm [shape: bf16[128,128], index: 2, kind: input, shape index: {}]
  %s3 = inlined_call_operand.vmem [shape: f32[1,128], index: 3, kind: input, shape index: {}]
  %s4 = inlined_call_operand.hbm [shape: bf16[128,128], index: 4, kind: input, shape index: {}]
  %s5 = inlined_call_operand.vmem [shape: f32[1,128], index: 5, kind: input, shape index: {}]
  %s6 = inlined_call_operand.hbm [shape: f32[16,128], index: 6, kind: output, shape index: {}]
  %s7 = sld [smem:[#allocation0]]
  $region69: #{tpu_custom_call.1} parent=0
    _
  %s9 = ssub.s32 1, %s7
  %s10 = scalar_select 0, %s9, %s7
  $region1: #{tpu_custom_call.1} parent=0
    #allocation2 [shape = 'u8[131072]{0}', space=vmem, size = 0x20000, scoped, tag = 'input window, operand 0']
    #allocation3 [shape = 's32[2]{0}', space=sflag, size = 0x8, scoped, tag = 'scoped memory for tpu_custom_call.1']
    #allocation4 [shape = 's32[2]{0}', space=sflag, size = 0x8, scoped, tag = 'scoped memory for tpu_custom_call.1']
    #allocation5 [shape = 'u8[32768]{0}', space=vmem, size = 0x8000, scoped, tag = 'input window, operand 2, single buffered']
    #allocation6 [shape = 's32[1]{0}', space=sflag, size = 0x4, scoped, tag = 'scoped memory for tpu_custom_call.1']
    #allocation7 [shape = 'u8[32768]{0}', space=vmem, size = 0x8000, scoped, tag = 'input window, operand 4, single buffered']
    #allocation8 [shape = 'u8[8192]{0}', space=vmem, size = 0x2000, scoped, tag = 'output window, operand 0']
    %11 = vsyncpa [#allocation3], 0
    %s12 = scalar_lea.sflag [#allocation3], 1
    %13 = vsyncpa %s12, 0
    %14 = vsyncpa [#allocation6], 0
    %15 = vsyncpa [#allocation4], 0
    %s16 = scalar_lea.sflag [#allocation4], 1
    %17 = vsyncpa %s16, 0
    loop: start=0, step=1, limit=4
    $region2: #{tpu_custom_call.1} parent=1 // loop_pre_header
      _
    $region3: #{tpu_custom_call.1} parent=1 // loop_header
      %s19 = sphi 0, %s23
      %p20 = scmp.ge.s32.totalorder %s19, 4
      %s29 = sphi 0, %s31
      %s32 = sphi 0, %s29
      %s33 = sphi 0, %s32
      %s49 = sphi 0, %s33
      %s55 = sphi 0, %s57
      %s58 = sphi 0, %s55
      %s59 = sphi 0, %s58
      %s75 = sphi 0, %s59
      %s79 = sphi 0, %s79
      %s81 = sphi 0, %s79
      %s82 = sphi 0, %s81
      %s96 = sphi 0, %s82
      %s100 = sphi 0, %s100
      %s102 = sphi 0, %s100
      %s103 = sphi 0, %s102
      %s117 = sphi 0, %s103
      %s121 = sphi 0, %s121
      %s123 = sphi 0, %s121
      %s124 = sphi 0, %s123
      %s138 = sphi 0, %s124
      %s142 = sphi 0, %s142
      %s144 = sphi 0, %s142
      %s145 = sphi 0, %s144
      %s159 = sphi 0, %s145
      %s165 = sphi 0, %s167
      %s168 = sphi 0, %s165
      %s169 = sphi 0, %s168
      %s185 = sphi 0, %s169
    $region4: #{tpu_custom_call.1} parent=1 // loop_header_branch
      %22 = sbr.rel (%p20) target = $region8
    $region5: #{tpu_custom_call.1} parent=1 // loop_body
      %s24 = ssub.s32 %s19, 1
      %s25 = ssub.s32 %s19, 2
      %s26 = sadd.s32 %s19, 1
      %s27 = ssub.s32 %s19, %s26
      %p28 = scmp.eq.s32.totalorder %s27, 0
      %s30 = sadd.s32 %s29, 1
      %s31 = scalar_select %p28, %s29, %s30
      %p34 = pneg %p28
      %p35 = scmp.eq.s32.totalorder %s19, 1
      %p36 = por %p34, %p35
      %p37 = scmp.ne.s32.totalorder %s29, %s32
      %p38 = scmp.eq.s32.totalorder %s19, 0
      %p39 = por %p37, %p38
      %p40 = scmp.ne.s32.totalorder %s29, %s32
      %p41 = scmp.eq.s32.totalorder %s24, 1
      %p42 = por %p40, %p41
      %p43 = scmp.ne.s32.totalorder %s32, %s33
      %p44 = scmp.eq.s32.totalorder %s24, 0
      %p45 = por %p43, %p44
      %p46 = scmp.ne.s32.totalorder %s32, %s33
      %p47 = scmp.eq.s32.totalorder %s25, 1
      %p48 = por %p46, %p47
      %p50 = scmp.ne.s32.totalorder %s33, %s49
      %p51 = scmp.eq.s32.totalorder %s25, 0
      %p52 = por %p50, %p51
      %s53 = ssub.s32 %s19, %s26
      %p54 = scmp.eq.s32.totalorder %s53, 0
      %s56 = sadd.s32 %s55, 1
      %s57 = scalar_select %p54, %s55, %s56
      %p60 = pneg %p54
      %p61 = scmp.eq.s32.totalorder %s19, 1
      %p62 = por %p60, %p61
      %p63 = scmp.ne.s32.totalorder %s55, %s58
      %p64 = scmp.eq.s32.totalorder %s19, 0
      %p65 = por %p63, %p64
      %p66 = scmp.ne.s32.totalorder %s55, %s58
      %p67 = scmp.eq.s32.totalorder %s24, 1
      %p68 = por %p66, %p67
      %p69 = scmp.ne.s32.totalorder %s58, %s59
      %p70 = scmp.eq.s32.totalorder %s24, 0
      %p71 = por %p69, %p70
      %p72 = scmp.ne.s32.totalorder %s58, %s59
      %p73 = scmp.eq.s32.totalorder %s25, 1
      %p74 = por %p72, %p73
      %p76 = scmp.ne.s32.totalorder %s59, %s75
      %p77 = scmp.eq.s32.totalorder %s25, 0
      %p78 = por %p76, %p77
      %s80 = sadd.s32 %s79, 1
      %p83 = scmp.eq.s32.totalorder %s19, 1
      %p84 = scmp.ne.s32.totalorder %s79, %s81
      %p85 = scmp.eq.s32.totalorder %s19, 0
      %p86 = por %p84, %p85
      %p87 = scmp.ne.s32.totalorder %s79, %s81
      %p88 = scmp.eq.s32.totalorder %s24, 1
      %p89 = por %p87, %p88
      %p90 = scmp.ne.s32.totalorder %s81, %s82
      %p91 = scmp.eq.s32.totalorder %s24, 0
      %p92 = por %p90, %p91
      %p93 = scmp.ne.s32.totalorder %s81, %s82
      %p94 = scmp.eq.s32.totalorder %s25, 1
      %p95 = por %p93, %p94
      %p97 = scmp.ne.s32.totalorder %s82, %s96
      %p98 = scmp.eq.s32.totalorder %s25, 0
      %p99 = por %p97, %p98
      %s101 = sadd.s32 %s100, 1
      %p104 = scmp.eq.s32.totalorder %s19, 1
      %p105 = scmp.ne.s32.totalorder %s100, %s102
      %p106 = scmp.eq.s32.totalorder %s19, 0
      %p107 = por %p105, %p106
      %p108 = scmp.ne.s32.totalorder %s100, %s102
      %p109 = scmp.eq.s32.totalorder %s24, 1
      %p110 = por %p108, %p109
      %p111 = scmp.ne.s32.totalorder %s102, %s103
      %p112 = scmp.eq.s32.totalorder %s24, 0
      %p113 = por %p111, %p112
      %p114 = scmp.ne.s32.totalorder %s102, %s103
      %p115 = scmp.eq.s32.totalorder %s25, 1
      %p116 = por %p114, %p115
      %p118 = scmp.ne.s32.totalorder %s103, %s117
      %p119 = scmp.eq.s32.totalorder %s25, 0
      %p120 = por %p118, %p119
      %s122 = sadd.s32 %s121, 1
      %p125 = scmp.eq.s32.totalorder %s19, 1
      %p126 = scmp.ne.s32.totalorder %s121, %s123
      %p127 = scmp.eq.s32.totalorder %s19, 0
      %p128 = por %p126, %p127
      %p129 = scmp.ne.s32.totalorder %s121, %s123
      %p130 = scmp.eq.s32.totalorder %s24, 1
      %p131 = por %p129, %p130
      %p132 = scmp.ne.s32.totalorder %s123, %s124
      %p133 = scmp.eq.s32.totalorder %s24, 0
      %p134 = por %p132, %p133
      %p135 = scmp.ne.s32.totalorder %s123, %s124
      %p136 = scmp.eq.s32.totalorder %s25, 1
      %p137 = por %p135, %p136
      %p139 = scmp.ne.s32.totalorder %s124, %s138
      %p140 = scmp.eq.s32.totalorder %s25, 0
      %p141 = por %p139, %p140
      %s143 = sadd.s32 %s142, 1
      %p146 = scmp.eq.s32.totalorder %s19, 1
      %p147 = scmp.ne.s32.totalorder %s142, %s144
      %p148 = scmp.eq.s32.totalorder %s19, 0
      %p149 = por %p147, %p148
      %p150 = scmp.ne.s32.totalorder %s142, %s144
      %p151 = scmp.eq.s32.totalorder %s24, 1
      %p152 = por %p150, %p151
      %p153 = scmp.ne.s32.totalorder %s144, %s145
      %p154 = scmp.eq.s32.totalorder %s24, 0
      %p155 = por %p153, %p154
      %p156 = scmp.ne.s32.totalorder %s144, %s145
      %p157 = scmp.eq.s32.totalorder %s25, 1
      %p158 = por %p156, %p157
      %p160 = scmp.ne.s32.totalorder %s145, %s159
      %p161 = scmp.eq.s32.totalorder %s25, 0
      %p162 = por %p160, %p161
      %s163 = ssub.s32 %s19, %s26
      %p164 = scmp.eq.s32.totalorder %s163, 0
      %s166 = sadd.s32 %s165, 1
      %s167 = scalar_select %p164, %s165, %s166
      %p170 = pneg %p164
      %p171 = scmp.eq.s32.totalorder %s19, 1
      %p172 = por %p170, %p171
      %p173 = scmp.ne.s32.totalorder %s165, %s168
      %p174 = scmp.eq.s32.totalorder %s19, 0
      %p175 = por %p173, %p174
      %p176 = scmp.ne.s32.totalorder %s165, %s168
      %p177 = scmp.eq.s32.totalorder %s24, 1
      %p178 = por %p176, %p177
      %p179 = scmp.ne.s32.totalorder %s168, %s169
      %p180 = scmp.eq.s32.totalorder %s24, 0
      %p181 = por %p179, %p180
      %p182 = scmp.ne.s32.totalorder %s168, %s169
      %p183 = scmp.eq.s32.totalorder %s25, 1
      %p184 = por %p182, %p183
      %p186 = scmp.ne.s32.totalorder %s169, %s185
      %p187 = scmp.eq.s32.totalorder %s25, 0
      %p188 = por %p186, %p187
      %p189 = scmp.le.s32.totalorder 1, %s19
      %p190 = scmp.lt.s32.totalorder %s19, 3
      %p191 = pnand %p189, %p190
      %p192 = pneg %p191
      // Predicated region
      $region9: #{tpu_custom_call.1} parent=5 // pred_check
        _
      $region10: #{tpu_custom_call.1} parent=5 // pred_check_branch
        %194 = sbr.rel (%p191) target = $region12
      $region11: #{tpu_custom_call.1} parent=5 // pred_region
        %s195 = ssub.s32 %s19, 1
        // Predicated region
        $region13: #{tpu_custom_call.1} parent=11 // pred_check
          %p196 = pneg %p92
        $region14: #{tpu_custom_call.1} parent=11 // pred_check_branch
          %198 = sbr.rel (%p196) target = $region16
        $region15: #{tpu_custom_call.1} parent=11 // pred_region
          %s200 = ssub.s32 1024, 1024
          %201 = vsyncadd [#allocation6], %s200
          %s202 = sshll.u32 [#allocation5], 4
          %s203 = int_to_ptr.vmem [resolvable:$true] %s202
          %208 = dma.hbm_to_vmem [thread:$0]  %s2, 1024, %s203, [#allocation6], 64, 64, 4
        $region16: #{tpu_custom_call.1} parent=11 // pred_fallthru
          _
        // Predicated region
        $region17: #{tpu_custom_call.1} parent=11 // pred_check
          %p209 = pneg %p113
        $region18: #{tpu_custom_call.1} parent=11 // pred_check_branch
          %211 = sbr.rel (%p209) target = $region20
        $region19: #{tpu_custom_call.1} parent=11 // pred_region
          _
        $region20: #{tpu_custom_call.1} parent=11 // pred_fallthru
          _
        // Predicated region
        $region21: #{tpu_custom_call.1} parent=11 // pred_check
          %p212 = pneg %p134
        $region22: #{tpu_custom_call.1} parent=11 // pred_check_branch
          %214 = sbr.rel (%p212) target = $region24
        $region23: #{tpu_custom_call.1} parent=11 // pred_region
          %s216 = ssub.s32 1024, 1024
          %217 = vsyncadd [#allocation6], %s216
          %s218 = sshll.u32 [#allocation7], 4
          %s219 = int_to_ptr.vmem [resolvable:$true] %s218
          %224 = dma.hbm_to_vmem [thread:$0]  %s4, 1024, %s219, [#allocation6], 64, 64, 4
        $region24: #{tpu_custom_call.1} parent=11 // pred_fallthru
          _
        // Predicated region
        $region25: #{tpu_custom_call.1} parent=11 // pred_check
          %p225 = pneg %p155
        $region26: #{tpu_custom_call.1} parent=11 // pred_check_branch
          %227 = sbr.rel (%p225) target = $region28
        $region27: #{tpu_custom_call.1} parent=11 // pred_region
          _
        $region28: #{tpu_custom_call.1} parent=11 // pred_fallthru
          _
      $region12: #{tpu_custom_call.1} parent=5 // pred_fallthru
        _
      %p228 = scmp.lt.s32.totalorder %s19, 2
      // Predicated region
      $region29: #{tpu_custom_call.1} parent=5 // pred_check
        %p229 = pneg %p228
      $region30: #{tpu_custom_call.1} parent=5 // pred_check_branch
        %231 = sbr.rel (%p229) target = $region32
      $region31: #{tpu_custom_call.1} parent=5 // pred_region
        // Predicated region
        $region33: #{tpu_custom_call.1} parent=31 // pred_check
          %p232 = pneg %p39
        $region34: #{tpu_custom_call.1} parent=31 // pred_check_branch
          %234 = sbr.rel (%p232) target = $region36
        $region35: #{tpu_custom_call.1} parent=31 // pred_region
          %s235 = sand.u32 %s29, 1
          %s236 = scalar_lea.sflag [#allocation3], %s235
          %s237 = sand.u32 %s29, 1
          %s238 = smul.addr %s237, 128
          %s239 = scalar_lea.vmem [#allocation2], %s238
          %s240 = smul.u32 8, %s19
          %s242 = ssub.s32 2048, 2048
          %243 = vsyncadd %s236, %s242
          %s244 = smul.addr %s240, 2
          %s245 = smul.addr %s244, 128
          %s246 = scalar_lea.hbm %s0, %s245
          %s247 = sshll.u32 %s239, 4
          %s248 = int_to_ptr.vmem [resolvable:$true] %s247
          %253 = dma.hbm_to_vmem [thread:$0]  %s246, 2048, %s248, %s236, 128, 128, 8
        $region36: #{tpu_custom_call.1} parent=31 // pred_fallthru
          _
        // Predicated region
        $region37: #{tpu_custom_call.1} parent=31 // pred_check
          %p254 = pneg %p65
        $region38: #{tpu_custom_call.1} parent=31 // pred_check_branch
          %256 = sbr.rel (%p254) target = $region40
        $region39: #{tpu_custom_call.1} parent=31 // pred_region
          %p257 = scmp.lt.s32.totalorder %s19, 1
          %s258 = scalar_select %p257, %s19, 1
          %s259 = smul.addr %s258, 8
          %s260 = scalar_lea.vmem %s1, %s259
        $region40: #{tpu_custom_call.1} parent=31 // pred_fallthru
          _
      $region32: #{tpu_custom_call.1} parent=5 // pred_fallthru
        _
      %p261 = scmp.le.s32.totalorder 1, %s19
      %p262 = scmp.lt.s32.totalorder %s19, 3
      %p263 = pnand %p261, %p262
      %p264 = pneg %p263
      // Predicated region
      $region41: #{tpu_custom_call.1} parent=5 // pred_check
        _
      $region42: #{tpu_custom_call.1} parent=5 // pred_check_branch
        %266 = sbr.rel (%p263) target = $region44
      $region43: #{tpu_custom_call.1} parent=5 // pred_region
        %s267 = ssub.s32 %s19, 1
        %s268 = sand.u32 %s32, 1
        %s269 = scalar_lea.sflag [#allocation3], %s268
        %s270 = sand.u32 %s32, 1
        %s271 = smul.addr %s270, 128
        %s272 = scalar_lea.vmem [#allocation2], %s271
        // Predicated region
        $region45: #{tpu_custom_call.1} parent=43 // pred_check
          %p273 = pneg %p45
        $region46: #{tpu_custom_call.1} parent=43 // pred_check_branch
          %275 = sbr.rel (%p273) target = $region48
        $region47: #{tpu_custom_call.1} parent=43 // pred_region
          %276 = dma.done %s269, 2048
        $region48: #{tpu_custom_call.1} parent=43 // pred_fallthru
          _
        // Predicated region
        $region49: #{tpu_custom_call.1} parent=43 // pred_check
          %p277 = pneg %p92
        $region50: #{tpu_custom_call.1} parent=43 // pred_check_branch
          %279 = sbr.rel (%p277) target = $region52
        $region51: #{tpu_custom_call.1} parent=43 // pred_region
          %280 = dma.done [#allocation6], 1024
        $region52: #{tpu_custom_call.1} parent=43 // pred_fallthru
          _
        // Predicated region
        $region53: #{tpu_custom_call.1} parent=43 // pred_check
          %p281 = pneg %p134
        $region54: #{tpu_custom_call.1} parent=43 // pred_check_branch
          %283 = sbr.rel (%p281) target = $region56
        $region55: #{tpu_custom_call.1} parent=43 // pred_region
          %284 = dma.done [#allocation6], 1024
        $region56: #{tpu_custom_call.1} parent=43 // pred_fallthru
          _
        %s285 = sand.u32 %s32, 1
        %s286 = scalar_lea.sflag [#allocation3], %s285
        %s287 = sand.u32 %s32, 1
        %s288 = smul.addr %s287, 128
        %s289 = scalar_lea.vmem [#allocation2], %s288
        %p290 = pneg %p45
        %p291 = pneg %p42
        %p292 = scmp.lt.s32.totalorder %s24, 1
        %s293 = scalar_select %p292, %s24, 1
        %s294 = smul.addr %s293, 8
        %s295 = scalar_lea.vmem %s1, %s294
        %p296 = pneg %p71
        %p297 = pneg %p68
        %p298 = pneg %p92
        %p299 = pneg %p89
        %p300 = pneg %p113
        %p301 = pneg %p110
        %p302 = pneg %p134
        %p303 = pneg %p131
        %p304 = pneg %p155
        %p305 = pneg %p152
        %p306 = pneg %p181
        %p307 = pneg %p178
        %s308 = sand.u32 %s168, 1
        %s309 = scalar_lea.sflag [#allocation4], %s308
        %s310 = sand.u32 %s168, 1
        %s311 = smul.addr %s310, 8
        %s312 = scalar_lea.vmem [#allocation8], %s311
        %s313 = smul.u32 8, %s24
        %p314 = scmp.lt.s32.totalorder %s24, 1
        %s315 = scalar_select %p314, %s24, 1
        %s316 = smul.addr %s315, 8
        %s317 = scalar_lea.vmem %s1, %s316
        %v319 = vld [vmem:[%s272] sm:$0xff]
        %v320 = vld [vmem:[%s272 + $0x8] sm:$0xff]
        %v321 = vld [vmem:[%s272 + $0x10] sm:$0xff]
        %v322 = vld [vmem:[%s272 + $0x18] sm:$0xff]
        %v323 = vld [vmem:[%s272 + $0x20] sm:$0xff]
        %v324 = vld [vmem:[%s272 + $0x28] sm:$0xff]
        %v325 = vld [vmem:[%s272 + $0x30] sm:$0xff]
        %v326 = vld [vmem:[%s272 + $0x38] sm:$0xff]
        %v327 = vld [vmem:[%s272 + $0x40] sm:$0xff]
        %v328 = vld [vmem:[%s272 + $0x48] sm:$0xff]
        %v329 = vld [vmem:[%s272 + $0x50] sm:$0xff]
        %v330 = vld [vmem:[%s272 + $0x58] sm:$0xff]
        %v331 = vld [vmem:[%s272 + $0x60] sm:$0xff]
        %v332 = vld [vmem:[%s272 + $0x68] sm:$0xff]
        %v333 = vld [vmem:[%s272 + $0x70] sm:$0xff]
        %v334 = vld [vmem:[%s272 + $0x78] sm:$0xff]
        %v335 = vld [vmem:[%s317] sm:$0xff]
        %v336 = vlaneseq
        %v337 = vand.u32 %v336, 127
        %338 = vset.pattern.permute.xlu0 0
        %339 = vperm.xlu0 %338, %v335
        %v340 = vpop.permute.xlu0 %339
        %vm341 = vcmp.lt.s32.totalorder %v337, %v340
        %v342 = vsel %vm341, 1, 0
        %v343 = vcvt.s32.f32 %v342
        %v344 = vlaneseq
        %v345 = vshrl.u32 %v344, 7
        %v346 = vsub.s32 0, %v345
        %v347 = vrot.slane %v343, %v346
        %349 = vbcast.lane.b32.xlu0 %v347, 256
        %v350 = vpop.permute.xlu0 %349
        %s352 = sor.u32 256, 8
        %353 = vbcast.lane.b32.xlu0 %v347, %s352
        %v354 = vpop.permute.xlu0 %353
        %v355 = vlaneseq
        %v356 = vshrl.u32 %v355, 7
        %v357 = vsub.s32 1, %v356
        %v358 = vrot.slane %v343, %v357
        %360 = vbcast.lane.b32.xlu0 %v358, 256
        %v361 = vpop.permute.xlu0 %360
        %s363 = sor.u32 256, 8
        %364 = vbcast.lane.b32.xlu0 %v358, %s363
        %v365 = vpop.permute.xlu0 %364
        %v366 = vlaneseq
        %v367 = vshrl.u32 %v366, 7
        %v368 = vsub.s32 2, %v367
        %v369 = vrot.slane %v343, %v368
        %371 = vbcast.lane.b32.xlu0 %v369, 256
        %v372 = vpop.permute.xlu0 %371
        %s374 = sor.u32 256, 8
        %375 = vbcast.lane.b32.xlu0 %v369, %s374
        %v376 = vpop.permute.xlu0 %375
        %v377 = vlaneseq
        %v378 = vshrl.u32 %v377, 7
        %v379 = vsub.s32 3, %v378
        %v380 = vrot.slane %v343, %v379
        %382 = vbcast.lane.b32.xlu0 %v380, 256
        %v383 = vpop.permute.xlu0 %382
        %s385 = sor.u32 256, 8
        %386 = vbcast.lane.b32.xlu0 %v380, %s385
        %v387 = vpop.permute.xlu0 %386
        %v388 = vlaneseq
        %v389 = vshrl.u32 %v388, 7
        %v390 = vsub.s32 4, %v389
        %v391 = vrot.slane %v343, %v390
        %393 = vbcast.lane.b32.xlu0 %v391, 256
        %v394 = vpop.permute.xlu0 %393
        %s396 = sor.u32 256, 8
        %397 = vbcast.lane.b32.xlu0 %v391, %s396
        %v398 = vpop.permute.xlu0 %397
        %v399 = vlaneseq
        %v400 = vshrl.u32 %v399, 7
        %v401 = vsub.s32 5, %v400
        %v402 = vrot.slane %v343, %v401
        %404 = vbcast.lane.b32.xlu0 %v402, 256
        %v405 = vpop.permute.xlu0 %404
        %s407 = sor.u32 256, 8
        %408 = vbcast.lane.b32.xlu0 %v402, %s407
        %v409 = vpop.permute.xlu0 %408
        %v410 = vlaneseq
        %v411 = vshrl.u32 %v410, 7
        %v412 = vsub.s32 6, %v411
        %v413 = vrot.slane %v343, %v412
        %415 = vbcast.lane.b32.xlu0 %v413, 256
        %v416 = vpop.permute.xlu0 %415
        %s418 = sor.u32 256, 8
        %419 = vbcast.lane.b32.xlu0 %v413, %s418
        %v420 = vpop.permute.xlu0 %419
        %v421 = vlaneseq
        %v422 = vshrl.u32 %v421, 7
        %v423 = vsub.s32 7, %v422
        %v424 = vrot.slane %v343, %v423
        %426 = vbcast.lane.b32.xlu0 %v424, 256
        %v427 = vpop.permute.xlu0 %426
        %s429 = sor.u32 256, 8
        %430 = vbcast.lane.b32.xlu0 %v424, %s429
        %v431 = vpop.permute.xlu0 %430
        %v432 = vmul.f32 %v319, %v350
        %v433 = vmul.f32 %v320, %v354
        %v434 = vmul.f32 %v321, %v361
        %v435 = vmul.f32 %v322, %v365
        %v436 = vmul.f32 %v323, %v372
        %v437 = vmul.f32 %v324, %v376
        %v438 = vmul.f32 %v325, %v383
        %v439 = vmul.f32 %v326, %v387
        %v440 = vmul.f32 %v327, %v394
        %v441 = vmul.f32 %v328, %v398
        %v442 = vmul.f32 %v329, %v405
        %v443 = vmul.f32 %v330, %v409
        %v444 = vmul.f32 %v331, %v416
        %v445 = vmul.f32 %v332, %v420
        %v446 = vmul.f32 %v333, %v427
        %v447 = vmul.f32 %v334, %v431
        %v448 = vadd.f32 %v432, %v433
        %v449 = vrot.slane %v448, 4
        %v450 = vadd.f32 %v448, %v449
        %v451 = vrot.slane %v450, 2
        %v452 = vadd.f32 %v450, %v451
        %v453 = vrot.slane %v452, 1
        %v454 = vadd.f32 %v452, %v453
        %v455 = vadd.f32 %v434, %v435
        %v456 = vrot.slane %v455, 4
        %v457 = vadd.f32 %v455, %v456
        %v458 = vrot.slane %v457, 2
        %v459 = vadd.f32 %v457, %v458
        %v460 = vrot.slane %v459, 1
        %v461 = vadd.f32 %v459, %v460
        %v462 = vadd.f32 %v436, %v437
        %v463 = vrot.slane %v462, 4
        %v464 = vadd.f32 %v462, %v463
        %v465 = vrot.slane %v464, 2
        %v466 = vadd.f32 %v464, %v465
        %v467 = vrot.slane %v466, 1
        %v468 = vadd.f32 %v466, %v467
        %v469 = vadd.f32 %v438, %v439
        %v470 = vrot.slane %v469, 4
        %v471 = vadd.f32 %v469, %v470
        %v472 = vrot.slane %v471, 2
        %v473 = vadd.f32 %v471, %v472
        %v474 = vrot.slane %v473, 1
        %v475 = vadd.f32 %v473, %v474
        %v476 = vadd.f32 %v440, %v441
        %v477 = vrot.slane %v476, 4
        %v478 = vadd.f32 %v476, %v477
        %v479 = vrot.slane %v478, 2
        %v480 = vadd.f32 %v478, %v479
        %v481 = vrot.slane %v480, 1
        %v482 = vadd.f32 %v480, %v481
        %v483 = vadd.f32 %v442, %v443
        %v484 = vrot.slane %v483, 4
        %v485 = vadd.f32 %v483, %v484
        %v486 = vrot.slane %v485, 2
        %v487 = vadd.f32 %v485, %v486
        %v488 = vrot.slane %v487, 1
        %v489 = vadd.f32 %v487, %v488
        %v490 = vadd.f32 %v444, %v445
        %v491 = vrot.slane %v490, 4
        %v492 = vadd.f32 %v490, %v491
        %v493 = vrot.slane %v492, 2
        %v494 = vadd.f32 %v492, %v493
        %v495 = vrot.slane %v494, 1
        %v496 = vadd.f32 %v494, %v495
        %v497 = vadd.f32 %v446, %v447
        %v498 = vrot.slane %v497, 4
        %v499 = vadd.f32 %v497, %v498
        %v500 = vrot.slane %v499, 2
        %v501 = vadd.f32 %v499, %v500
        %v502 = vrot.slane %v501, 1
        %v503 = vadd.f32 %v501, %v502
        %vm504 = vcmask 130048
        %v505 = vsel %vm504, %v343, 0.0
        %506 = vadd.xlane.f32.xlu0 %v505
        %v507 = vpop.xlane.xlu0 %506
        %v508 = vmax.f32 %v507, 1.0
        %v510 = vrot.slane %v508, 1
        %v511 = vrot.slane %v508, 2
        %v512 = vrot.slane %v508, 3
        %v513 = vrot.slane %v508, 4
        %v514 = vrot.slane %v508, 5
        %v515 = vrot.slane %v508, 6
        %v516 = vrot.slane %v508, 7
        %v525 = vrcp.pop %v508
        %v526 = vmul.f32 %v454, %v525
        %v527 = vrcp.pop %v510
        %v528 = vmul.f32 %v461, %v527
        %v529 = vrcp.pop %v511
        %v530 = vmul.f32 %v468, %v529
        %v531 = vrcp.pop %v512
        %v532 = vmul.f32 %v475, %v531
        %v533 = vrcp.pop %v513
        %v534 = vmul.f32 %v482, %v533
        %v535 = vrcp.pop %v514
        %v536 = vmul.f32 %v489, %v535
        %v537 = vrcp.pop %v515
        %v538 = vmul.f32 %v496, %v537
        %v539 = vrcp.pop %v516
        %v540 = vmul.f32 %v503, %v539
        %v541 = vpack.c.bf16 %v526, %v526
        %v542 = vpack.c.bf16 %v528, %v528
        %v543 = vpack.c.bf16 %v530, %v530
        %v544 = vpack.c.bf16 %v532, %v532
        %v545 = vpack.c.bf16 %v534, %v534
        %v546 = vpack.c.bf16 %v536, %v536
        %v547 = vpack.c.bf16 %v538, %v538
        %v548 = vpack.c.bf16 %v540, %v540
        %v549 = vld [vmem:[#allocation5] sm:$0xf]
        %v550 = vld [vmem:[#allocation5 + $0x4] sm:$0xf]
        %v551 = vld [vmem:[#allocation5 + $0x8] sm:$0xf]
        %v552 = vld [vmem:[#allocation5 + $0xc] sm:$0xf]
        %v553 = vld [vmem:[#allocation5 + $0x10] sm:$0xf]
        %v554 = vld [vmem:[#allocation5 + $0x14] sm:$0xf]
        %v555 = vld [vmem:[#allocation5 + $0x18] sm:$0xf]
        %v556 = vld [vmem:[#allocation5 + $0x1c] sm:$0xf]
        %v557 = vld [vmem:[#allocation5 + $0x20] sm:$0xf]
        %v558 = vld [vmem:[#allocation5 + $0x24] sm:$0xf]
        %v559 = vld [vmem:[#allocation5 + $0x28] sm:$0xf]
        %v560 = vld [vmem:[#allocation5 + $0x2c] sm:$0xf]
        %v561 = vld [vmem:[#allocation5 + $0x30] sm:$0xf]
        %v562 = vld [vmem:[#allocation5 + $0x34] sm:$0xf]
        %v563 = vld [vmem:[#allocation5 + $0x38] sm:$0xf]
        %v564 = vld [vmem:[#allocation5 + $0x3c] sm:$0xf]
        %v565 = vld [vmem:[%s3] sm:$0x1]
        %v567 = vlaneseq
        %v568 = vshrl.u32 %v567, 7
        %v569 = vsub.s32 0, %v568
        %v570 = vrot.slane %v565, %v569
        %v580 = vunpack.c.l.b16 %v541
        %v581 = vunpack.c.l.b16 %v542
        %v582 = vunpack.c.l.b16 %v543
        %v583 = vunpack.c.l.b16 %v544
        %v584 = vunpack.c.l.b16 %v545
        %v585 = vunpack.c.l.b16 %v546
        %v586 = vunpack.c.l.b16 %v547
        %v587 = vunpack.c.l.b16 %v548
        %v588 = vrot.slane %v581, 7
        %vm589 = vcmask 1041409
        %v590 = vsel %vm589, %v588, %v580
        %v591 = vrot.slane %v582, 6
        %vm592 = vcmask 1042434
        %v593 = vsel %vm592, %v591, %v590
        %v594 = vrot.slane %v583, 5
        %vm595 = vcmask 1043459
        %v596 = vsel %vm595, %v594, %v593
        %v597 = vrot.slane %v584, 4
        %vm598 = vcmask 1044484
        %v599 = vsel %vm598, %v597, %v596
        %v600 = vrot.slane %v585, 3
        %vm601 = vcmask 1045509
        %v602 = vsel %vm601, %v600, %v599
        %v603 = vrot.slane %v586, 2
        %vm604 = vcmask 1046534
        %v605 = vsel %vm604, %v603, %v602
        %v606 = vrot.slane %v587, 1
        %vm607 = vcmask 1047559
        %v608 = vsel %vm607, %v606, %v605
        %v609 = vpack.c.b16 %v608, %v608
        %v627 = vunpack.c.l.b16 %v549
        %v628 = vunpack.c.l.b16 %v550
        %v629 = vunpack.c.l.b16 %v551
        %v630 = vunpack.c.l.b16 %v552
        %v631 = vunpack.c.l.b16 %v553
        %v632 = vunpack.c.l.b16 %v554
        %v633 = vunpack.c.l.b16 %v555
        %v634 = vunpack.c.l.b16 %v556
        %v635 = vunpack.c.l.b16 %v557
        %v636 = vunpack.c.l.b16 %v558
        %v637 = vunpack.c.l.b16 %v559
        %v638 = vunpack.c.l.b16 %v560
        %v639 = vunpack.c.l.b16 %v561
        %v640 = vunpack.c.l.b16 %v562
        %v641 = vunpack.c.l.b16 %v563
        %v642 = vunpack.c.l.b16 %v564
        %v643 = vpack.c.b16 %v628, %v627
        %v644 = vpack.c.b16 %v630, %v629
        %v645 = vpack.c.b16 %v632, %v631
        %v646 = vpack.c.b16 %v634, %v633
        %v647 = vpack.c.b16 %v636, %v635
        %v648 = vpack.c.b16 %v638, %v637
        %v649 = vpack.c.b16 %v640, %v639
        %v650 = vpack.c.b16 %v642, %v641
        %659 = vmatprep.subr.bf16.mxu0 0
        %660 = vmatpush1.bf16.msra.mxu0 %v643
        %661 = vmatprep.subr.bf16.mxu0 0
        %662 = vmatpush1.bf16.msra.mxu0 %v644
        %663 = vmatprep.subr.bf16.mxu0 0
        %664 = vmatpush1.bf16.msra.mxu0 %v645
        %665 = vmatprep.subr.bf16.mxu0 0
        %666 = vmatpush1.bf16.msra.mxu0 %v646
        %667 = vmatprep.subr.bf16.mxu0 0
        %668 = vmatpush1.bf16.msra.mxu0 %v647
        %669 = vmatprep.subr.bf16.mxu0 0
        %670 = vmatpush1.bf16.msra.mxu0 %v648
        %671 = vmatprep.subr.bf16.mxu0 0
        %672 = vmatpush1.bf16.msra.mxu0 %v649
        %673 = vmatprep.subr.bf16.mxu0 0
        %674 = vmatpush1.bf16.msra.mxu0 %v650
        %675 = vmatprep.subr.bf16.mxu0 0
        %676 = vmatpush1.bf16.msra.mxu0 0
        %677 = vmatprep.subr.bf16.mxu0 0
        %678 = vmatpush1.bf16.msra.mxu0 0
        %679 = vmatprep.subr.bf16.mxu0 0
        %680 = vmatpush1.bf16.msra.mxu0 0
        %681 = vmatprep.subr.bf16.mxu0 0
        %682 = vmatpush1.bf16.msra.mxu0 0
        %683 = vmatprep.subr.bf16.mxu0 0
        %684 = vmatpush1.bf16.msra.mxu0 0
        %685 = vmatprep.subr.bf16.mxu0 0
        %686 = vmatpush1.bf16.msra.mxu0 0
        %687 = vmatprep.subr.bf16.mxu0 0
        %688 = vmatpush1.bf16.msra.mxu0 0
        %689 = vmatprep.subr.bf16.mxu0 0
        %690 = vmatpush1.bf16.msra.mxu0 0
        %691 = vmatprep.mubr.bf16.mxu0 0
        %692 = vmatmul.mubr.bf16.gmra.mrb[0].mxu0 %v609
        %v693 = vpop.f32.mrb[0].mxu0
        %v694 = vadd.f32 %v570, %v693
        %v695 = vpop.f32.mrb[0].mxu0
        %v696 = vpop.f32.mrb[0].mxu0
        %v697 = vpop.f32.mrb[0].mxu0
        %698 = vdwg.mxu0
        %v699 = vmul.f32 %v694, %v694
        %v700 = vmul.f32 %v694, %v699
        %v701 = vmul.f32 %v700, 0.044715
        %v702 = vadd.f32 %v694, %v701
        %v703 = vmul.f32 %v702, 0.7978846
        %v704 = vtanh.pop %v703
        %v705 = vadd.f32 %v704, 1.0
        %v706 = vmul.f32 %v705, 0.5
        %v707 = vmul.f32 %v694, %v706
        %v708 = vpack.c.bf16 %v707, %v707
        %v709 = vld [vmem:[#allocation7] sm:$0xf]
        %v710 = vld [vmem:[#allocation7 + $0x4] sm:$0xf]
        %v711 = vld [vmem:[#allocation7 + $0x8] sm:$0xf]
        %v712 = vld [vmem:[#allocation7 + $0xc] sm:$0xf]
        %v713 = vld [vmem:[#allocation7 + $0x10] sm:$0xf]
        %v714 = vld [vmem:[#allocation7 + $0x14] sm:$0xf]
        %v715 = vld [vmem:[#allocation7 + $0x18] sm:$0xf]
        %v716 = vld [vmem:[#allocation7 + $0x1c] sm:$0xf]
        %v717 = vld [vmem:[#allocation7 + $0x20] sm:$0xf]
        %v718 = vld [vmem:[#allocation7 + $0x24] sm:$0xf]
        %v719 = vld [vmem:[#allocation7 + $0x28] sm:$0xf]
        %v720 = vld [vmem:[#allocation7 + $0x2c] sm:$0xf]
        %v721 = vld [vmem:[#allocation7 + $0x30] sm:$0xf]
        %v722 = vld [vmem:[#allocation7 + $0x34] sm:$0xf]
        %v723 = vld [vmem:[#allocation7 + $0x38] sm:$0xf]
        %v724 = vld [vmem:[#allocation7 + $0x3c] sm:$0xf]
        %v725 = vld [vmem:[%s5] sm:$0x1]
        %v727 = vlaneseq
        %v728 = vshrl.u32 %v727, 7
        %v729 = vsub.s32 0, %v728
        %v730 = vrot.slane %v725, %v729
        %v748 = vunpack.c.l.b16 %v709
        %v749 = vunpack.c.l.b16 %v710
        %v750 = vunpack.c.l.b16 %v711
        %v751 = vunpack.c.l.b16 %v712
        %v752 = vunpack.c.l.b16 %v713
        %v753 = vunpack.c.l.b16 %v714
        %v754 = vunpack.c.l.b16 %v715
        %v755 = vunpack.c.l.b16 %v716
        %v756 = vunpack.c.l.b16 %v717
        %v757 = vunpack.c.l.b16 %v718
        %v758 = vunpack.c.l.b16 %v719
        %v759 = vunpack.c.l.b16 %v720
        %v760 = vunpack.c.l.b16 %v721
        %v761 = vunpack.c.l.b16 %v722
        %v762 = vunpack.c.l.b16 %v723
        %v763 = vunpack.c.l.b16 %v724
        %v764 = vpack.c.b16 %v749, %v748
        %v765 = vpack.c.b16 %v751, %v750
        %v766 = vpack.c.b16 %v753, %v752
        %v767 = vpack.c.b16 %v755, %v754
        %v768 = vpack.c.b16 %v757, %v756
        %v769 = vpack.c.b16 %v759, %v758
        %v770 = vpack.c.b16 %v761, %v760
        %v771 = vpack.c.b16 %v763, %v762
        %780 = vmatprep.subr.bf16.mxu0 0
        %781 = vmatpush1.bf16.msra.mxu0 %v764
        %782 = vmatprep.subr.bf16.mxu0 0
        %783 = vmatpush1.bf16.msra.mxu0 %v765
        %784 = vmatprep.subr.bf16.mxu0 0
        %785 = vmatpush1.bf16.msra.mxu0 %v766
        %786 = vmatprep.subr.bf16.mxu0 0
        %787 = vmatpush1.bf16.msra.mxu0 %v767
        %788 = vmatprep.subr.bf16.mxu0 0
        %789 = vmatpush1.bf16.msra.mxu0 %v768
        %790 = vmatprep.subr.bf16.mxu0 0
        %791 = vmatpush1.bf16.msra.mxu0 %v769
        %792 = vmatprep.subr.bf16.mxu0 0
        %793 = vmatpush1.bf16.msra.mxu0 %v770
        %794 = vmatprep.subr.bf16.mxu0 0
        %795 = vmatpush1.bf16.msra.mxu0 %v771
        %796 = vmatprep.subr.bf16.mxu0 0
        %797 = vmatpush1.bf16.msra.mxu0 0
        %798 = vmatprep.subr.bf16.mxu0 0
        %799 = vmatpush1.bf16.msra.mxu0 0
        %800 = vmatprep.subr.bf16.mxu0 0
        %801 = vmatpush1.bf16.msra.mxu0 0
        %802 = vmatprep.subr.bf16.mxu0 0
        %803 = vmatpush1.bf16.msra.mxu0 0
        %804 = vmatprep.subr.bf16.mxu0 0
        %805 = vmatpush1.bf16.msra.mxu0 0
        %806 = vmatprep.subr.bf16.mxu0 0
        %807 = vmatpush1.bf16.msra.mxu0 0
        %808 = vmatprep.subr.bf16.mxu0 0
        %809 = vmatpush1.bf16.msra.mxu0 0
        %810 = vmatprep.subr.bf16.mxu0 0
        %811 = vmatpush1.bf16.msra.mxu0 0
        %812 = vmatprep.mubr.bf16.mxu0 0
        %813 = vmatmul.mubr.bf16.gmra.mrb[0].mxu0 %v708
        %v814 = vpop.f32.mrb[0].mxu0
        %v815 = vadd.f32 %v730, %v814
        %v816 = vpop.f32.mrb[0].mxu0
        %v817 = vpop.f32.mrb[0].mxu0
        %v818 = vpop.f32.mrb[0].mxu0
        %819 = vdwg.mxu0
        %820 = vst [vmem:[%s312] sm:$0xff] %v815
        %s821 = sand.u32 %s168, 1
        %s822 = scalar_lea.sflag [#allocation4], %s821
        %s823 = sand.u32 %s168, 1
        %s824 = smul.addr %s823, 8
        %s825 = scalar_lea.vmem [#allocation8], %s824
        // Predicated region
        $region57: #{tpu_custom_call.1} parent=43 // pred_check
          %p826 = pneg %p178
        $region58: #{tpu_custom_call.1} parent=43 // pred_check_branch
          %828 = sbr.rel (%p826) target = $region60
        $region59: #{tpu_custom_call.1} parent=43 // pred_region
          %s830 = ssub.s32 128, 128
          %831 = vsyncadd %s822, %s830
          %s832 = smul.addr %s24, 128
          %s833 = scalar_lea.hbm %s6, %s832
          %s835 = sshll.u32 %s825, 4
          %s836 = int_to_ptr.vmem [resolvable:$true] %s835
          %838 = dma.vmem_to_hbm [thread:$0]  %s836, 128, %s833, %s822
        $region60: #{tpu_custom_call.1} parent=43 // pred_fallthru
          _
      $region44: #{tpu_custom_call.1} parent=5 // pred_fallthru
        _
      %p839 = scmp.le.s32.totalorder 2, %s19
      // Predicated region
      $region61: #{tpu_custom_call.1} parent=5 // pred_check
        %p840 = pneg %p839
      $region62: #{tpu_custom_call.1} parent=5 // pred_check_branch
        %842 = sbr.rel (%p840) target = $region64
      $region63: #{tpu_custom_call.1} parent=5 // pred_region
        %s843 = ssub.s32 %s19, 2
        // Predicated region
        $region65: #{tpu_custom_call.1} parent=63 // pred_check
          %p844 = pneg %p184
        $region66: #{tpu_custom_call.1} parent=63 // pred_check_branch
          %846 = sbr.rel (%p844) target = $region68
        $region67: #{tpu_custom_call.1} parent=63 // pred_region
          %s847 = sand.u32 %s169, 1
          %s848 = scalar_lea.sflag [#allocation4], %s847
          %s849 = sand.u32 %s169, 1
          %s850 = smul.addr %s849, 8
          %s851 = scalar_lea.vmem [#allocation8], %s850
          %852 = dma.done %s848, 128
        $region68: #{tpu_custom_call.1} parent=63 // pred_fallthru
          _
      $region64: #{tpu_custom_call.1} parent=5 // pred_fallthru
        _
    $region6: #{tpu_custom_call.1} parent=1 // loop_footer
      %s23 = sadd.s32 1, %s19
    $region7: #{tpu_custom_call.1} parent=1 // loop_footer_branch
      %18 = sbr.rel target = $region3
    $region8: #{tpu_custom_call.1} parent=1 // loop_exit
      _
    %853 = vsyncpa [#allocation3], 1
    %s854 = scalar_lea.sflag [#allocation3], 1
    %855 = vsyncpa %s854, 1
    %856 = vsyncpa [#allocation6], 1
    %857 = vsyncpa [#allocation4], 1
    %s858 = scalar_lea.sflag [#allocation4], 1
    %859 = vsyncpa %s858, 1

</llo_original>
